<compile_context>
chip_gen: v5e
topology: v5e:2x2
jax: 0.10.0
libtpu: 0.0.40
codegen_flags: <defaults>
</compile_context>

<pallas_src>
import functools

import jax
import jax.numpy as jnp
from jax.experimental import pallas as pl
from jax.experimental.pallas import tpu as pltpu


# ---------------------------------------------------------------------------
# Pallas kernel: one activation row-tile -> relu(a @ w + b), lane-dense in/out.
# ---------------------------------------------------------------------------
def _stage_kernel(a_ref, w_ref, b_ref, o_ref):
    # a_ref: (tm, Kp) bf16   w_ref: (Kp, Cp) bf16   b_ref: (1, Cp) f32
    # o_ref: (tm, Cp) bf16   (Cp == 128 for the packed small-C_out stages)
    acc = jnp.dot(a_ref[...], w_ref[...], preferred_element_type=jnp.float32)
    acc = jnp.maximum(acc + b_ref[...], 0.0)
    o_ref[...] = acc.astype(o_ref.dtype)


@functools.lru_cache(maxsize=None)
def _tpu_budgets():
    """(activation-tile byte budget, vmem_limit_bytes): generation-aware but safe."""
    act_budget, vmem_limit = 4 << 20, 32 << 20          # safe on v5e / v6e / v7x
    try:
        cap = int(getattr(pltpu.get_tpu_info(), "vmem_capacity_bytes", 0))
        if cap >= (128 << 20):                           # 128 MiB parts (v5e / v6e)
            act_budget, vmem_limit = 8 << 20, 64 << 20
    except Exception:                                    # unknown part: stay conservative
        pass
    return act_budget, vmem_limit


def _choose_tm(m_rows, k_pk, act_budget_bytes):
    """Row tile for the packed (m_rows, k_pk) bf16 activation.

    Prefers a divisor of m_rows (no pad copy) that is a multiple of 8 (sublanes),
    fits the byte budget, and yields >= 8 grid steps (>= 4 per TC on 2-TC parts).
    Returns (tm, padded_rows).
    """
    target = max(8, (act_budget_bytes // (2 * k_pk)) // 8 * 8)
    cap = max(8, (m_rows // 8) // 8 * 8)
    limit = min(target, cap)
    best = None
    d = 1
    while d * d <= m_rows:
        if m_rows % d == 0:
            for c in (d, m_rows // d):
                if c % 8 == 0 and c <= limit and (best is None or c > best):
                    best = c
        d += 1
    if best is not None:
        return best, m_rows
    # No usable divisor (irregular shapes only): fall back to a padded tiling.
    tm = limit
    return tm, -(-m_rows // tm) * tm


def _run_stage_pallas(a_pk, w_pk, b_pk, *, tm, vmem_limit):
    m_rows, k_pk = a_pk.shape
    c_pk = w_pk.shape[1]
    cost = pl.CostEstimate(
        flops=2 * m_rows * k_pk * c_pk,
        transcendentals=0,
        bytes_accessed=2 * (a_pk.size + w_pk.size + m_rows * c_pk) + 4 * b_pk.size,
    )
    # NOTE: weight/bias specs are constant-indexed (resident across grid steps).
    return pl.pallas_call(
        _stage_kernel,
        out_shape=jax.ShapeDtypeStruct((m_rows, c_pk), jnp.bfloat16),
        grid=(m_rows // tm,),
        in_specs=[
            pl.BlockSpec((tm, k_pk), lambda i: (i, 0)),     # activation tile (bf16)
            pl.BlockSpec((k_pk, c_pk), lambda i: (0, 0)),   # block-diag weight
            pl.BlockSpec((1, c_pk), lambda i: (0, 0)),      # bias
        ],
        out_specs=pl.BlockSpec((tm, c_pk), lambda i: (i, 0)),
        compiler_params=pltpu.CompilerParams(
            dimension_semantics=("parallel",),   # shard row tiles over v7x's 2 TCs
            vmem_limit_bytes=vmem_limit,
        ),
        cost_estimate=cost,
    )(a_pk, w_pk, b_pk)


def _patch_conv_stage_cl(x_cl, w, b):
    """One synthetic backbone stage, bf16 channel-last in / bf16 channel-last out.

    x_cl: (N, D, H, W, C) bf16    w: (C_out, C, 2, 2, 2) f32    b: (C_out,) f32
    returns (N, D//2, H//2, W//2, C_out) bf16 == relu(conv3d(x, w, stride=2) + b)
    """
    N, D, H, W, C = x_cl.shape
    c_out = w.shape[0]
    assert D % 2 == 0 and H % 2 == 0 and W % 2 == 0, "spatial dims must be even"
    D2, H2, W2 = D // 2, H // 2, W // 2
    M, K = N * D2 * H2 * W2, C * 8

    # im2col of non-overlapping 2x2x2 patches; K ordered (kd, kh, kw, C): with C last
    # the bf16 permute moves 2*C contiguous elements per chunk.
    p = x_cl.reshape(N, D2, 2, H2, 2, W2, 2, C)
    p = jnp.transpose(p, (0, 1, 3, 5, 2, 4, 6, 7))            # (N,D2,H2,W2,2,2,2,C)
    a = p.reshape(M, K)                                        # bf16

    # Weight K axis reordered once at trace time to match (kd, kh, kw, C).
    w2d = jnp.transpose(w, (2, 3, 4, 1, 0)).reshape(K, c_out)  # f32

    if M < 1024:
        # Tiny deep stages: pallas_call/DMA setup exceeds the work; let XLA fuse it.
        out2d = jax.nn.relu(jnp.dot(a.astype(jnp.float32), w2d) + b[None, :])
        return out2d.astype(jnp.bfloat16).reshape(N, D2, H2, W2, c_out)

    # Lane-dense packing: fold g adjacent rows into the K axis (free, contiguous
    # reshape) and use a block-diagonal weight so both the activation load and the
    # output store are dense 128-lane accesses, with no in-kernel reshape/shuffle.
    g = 128 // c_out if (c_out < 128 and 128 % c_out == 0
                         and M % (128 // c_out) == 0) else 1
    a_pk = a.reshape(M // g, g * K)
    if g > 1:
        w_pk = jnp.kron(jnp.eye(g, dtype=w2d.dtype), w2d)      # (g*K, 128) block-diag
        b_pk = jnp.tile(b, (g,)).reshape(1, g * c_out)
    else:
        w_pk = w2d
        b_pk = b.reshape(1, c_out)
    w_pk = w_pk.astype(jnp.bfloat16)
    b_pk = b_pk.astype(jnp.float32)

    act_budget, vmem_limit = _tpu_budgets()
    tm, m_pad = _choose_tm(M // g, g * K, act_budget)
    if m_pad > M // g:                                         # rare: irregular shapes
        a_pk = jnp.pad(a_pk, ((0, m_pad - M // g), (0, 0)))
    out_pk = _run_stage_pallas(a_pk, w_pk, b_pk, tm=tm, vmem_limit=vmem_limit)
    out2d = out_pk[: M // g].reshape(M, c_out)                 # free row-major unpack
    return out2d.reshape(N, D2, H2, W2, c_out)


class TimmUniversalEncoderPallas:
    """JAX/Pallas counterpart of TimmUniversalEncoder (synthetic conv backbone)."""

    def __init__(self, in_channels=3, depth=5, output_stride=32,
                 stage_channels=(16, 32, 64, 128, 256), key=None):
        assert depth <= len(stage_channels)
        self._in_channels = in_channels
        self._depth = depth
        self._output_stride = output_stride
        channels = list(stage_channels[:depth])
        self._out_channels = [in_channels] + channels

        if key is None:
            key = jax.random.PRNGKey(42)
        self.weights, self.biases = [], []
        c_prev = in_channels
        for i, c_out in enumerate(channels):
            kw = jax.random.fold_in(key, 2 * i)
            kb = jax.random.fold_in(key, 2 * i + 1)
            fan_in = c_prev * 8
            wgt = jax.random.normal(kw, (c_out, c_prev, 2, 2, 2), jnp.float32)
            wgt = wgt * (1.0 / jnp.sqrt(jnp.float32(fan_in)))
            bia = 0.01 * jax.random.normal(kb, (c_out,), jnp.float32)
            self.weights.append(wgt)
            self.biases.append(bia)
            c_prev = c_out

    def __call__(self, x):
        # x: (N, C, D, H, W) float32 (NCDHW, matching the PyTorch module's layout).
        N, C, D, H, W = x.shape
        s = 2 ** self._depth
        assert D % s == 0 and H % s == 0 and W % s == 0, (
            "spatial dims must be divisible by 2**depth")

        features = [x]
        # Inter-stage activations stay bf16 channel-last; f32 NCDHW only at the edges.
        h_cl = jnp.transpose(x, (0, 2, 3, 4, 1)).astype(jnp.bfloat16)
        for wgt, bia in zip(self.weights, self.biases):
            h_cl = _patch_conv_stage_cl(h_cl, wgt, bia)
            # TODO(synk): emitting NCDHW directly from the kernel (2nd output + XLU
            # transpose) conflicts with the lane-packed output layout; left as a single
            # fused XLA transpose+cast pass per returned feature.
            features.append(
                jnp.transpose(h_cl, (0, 4, 1, 2, 3)).astype(jnp.float32))
        return features

    @property
    def out_channels(self):
        return self._out_channels

    @property
    def output_stride(self):
        return min(self._output_stride, 2 ** self._depth)


if __name__ == "__main__":
    key = jax.random.PRNGKey(0)
    kx, kp = jax.random.split(key)

    # Small 3D input consistent with a depth-5 / output_stride-32 encoder.
    N, C, S = 2, 4, 32
    x = jax.random.normal(kx, (N, C, S, S, S), dtype=jnp.float32)

    enc = TimmUniversalEncoderPallas(in_channels=C, depth=5, output_stride=32, key=kp)
    feats = enc(x)
    feats = jax.block_until_ready(feats)

    # Forward contract of TimmUniversalEncoder.
    assert len(feats) == enc._depth + 1
    assert [int(f.shape[1]) for f in feats] == enc.out_channels
    for i, f in enumerate(feats):
        assert f.shape[0] == N
        assert f.shape[2] == f.shape[3] == f.shape[4] == S // (2 ** i)
        assert f.dtype == jnp.float32
    assert enc.output_stride == 32

    # Numerical sanity of the first (Pallas, bf16-MXU, block-diag packed) stage
    # against a pure-JAX f32 reference conv.
    x_cl = jnp.transpose(x, (0, 2, 3, 4, 1))
    S2 = S // 2
    p = jnp.transpose(x_cl.reshape(N, S2, 2, S2, 2, S2, 2, C),
                      (0, 1, 3, 5, 2, 4, 6, 7)).reshape(N * S2 * S2 * S2, C * 8)
    w2d_ref = jnp.transpose(enc.weights[0], (2, 3, 4, 1, 0)).reshape(C * 8, -1)
    ref = jax.nn.relu(jnp.dot(p, w2d_ref) + enc.biases[0][None, :])
    got = jnp.transpose(feats[1], (0, 2, 3, 4, 1)).reshape(ref.shape)
    rel_err = float(jnp.max(jnp.abs(ref - got)) / (jnp.max(jnp.abs(ref)) + 1e-6))
    assert rel_err < 3e-2, f"stage-1 mismatch: rel_err={rel_err}"

    print("KERNEL_OK")
</pallas_src>

<mosaic_0001>
module attributes {stable_mosaic.version = 11 : i64} {
  func.func @_stage_kernel(%arg0: i32, %arg1: memref<128x256xbf16, #tpu.memory_space<vmem>>, %arg2: memref<256x128xbf16, #tpu.memory_space<vmem>>, %arg3: memref<1x128xf32, #tpu.memory_space<vmem>>, %arg4: memref<128x128xbf16, #tpu.memory_space<vmem>>) attributes {dimension_semantics = [#tpu.dimension_semantics<parallel>], iteration_bounds = array<i64: 8>, scalar_prefetch = 0 : i64, scratch_operands = 0 : i64, tpu.core_type = #tpu.core_type<tc>, window_params = [{transform_indices = @transform_0, window_bounds = array<i64: 128, 256>}, {pipeline_mode = #tpu.pipeline_mode<synchronous>, transform_indices = @transform_1, window_bounds = array<i64: 256, 128>}, {pipeline_mode = #tpu.pipeline_mode<synchronous>, transform_indices = @transform_2, window_bounds = array<i64: 1, 128>}, {transform_indices = @transform_3, window_bounds = array<i64: 128, 128>}]} {
    %c0 = arith.constant 0 : index
    %c0_0 = arith.constant 0 : index
    %0 = vector.load %arg1[%c0, %c0_0] : memref<128x256xbf16, #tpu.memory_space<vmem>>, vector<128x256xbf16>
    %c0_1 = arith.constant 0 : index
    %c0_2 = arith.constant 0 : index
    %1 = vector.load %arg2[%c0_1, %c0_2] : memref<256x128xbf16, #tpu.memory_space<vmem>>, vector<256x128xbf16>
    %cst = arith.constant dense<0.000000e+00> : vector<128x128xf32>
    %2 = tpu.matmul %0, %1, %cst {dimension_numbers = #tpu.dot_dimension_numbers<[1], [0], [0], [1], [0, 0, 1, 1], [], []>} : vector<128x256xbf16>, vector<256x128xbf16>, vector<128x128xf32> -> vector<128x128xf32>
    %c0_3 = arith.constant 0 : index
    %c0_4 = arith.constant 0 : index
    %3 = vector.load %arg3[%c0_3, %c0_4] : memref<1x128xf32, #tpu.memory_space<vmem>>, vector<1x128xf32>
    %4 = vector.broadcast %3 : vector<1x128xf32> to vector<128x128xf32>
    %5 = arith.addf %2, %4 : vector<128x128xf32>
    %cst_5 = arith.constant 0.000000e+00 : f32
    %6 = vector.broadcast %cst_5 : f32 to vector<128x128xf32>
    %7 = arith.maximumf %5, %6 : vector<128x128xf32>
    %8 = arith.truncf %7 : vector<128x128xf32> to vector<128x128xbf16>
    %c0_6 = arith.constant 0 : index
    %c0_7 = arith.constant 0 : index
    %9 = vector.load %arg4[%c0_6, %c0_7] : memref<128x128xbf16, #tpu.memory_space<vmem>>, vector<128x128xbf16>
    tpu.vector_store %arg4[%c0_6, %c0_7], %8 {strides = array<i32>} : memref<128x128xbf16, #tpu.memory_space<vmem>>, vector<128x128xbf16>,
    return
  }
  func.func @transform_0(%arg0: i32) -> (i32, i32) {
    %c0_i32 = arith.constant 0 : i32
    %c0_i32_0 = arith.constant 0 : i32
    return %arg0, %c0_i32 : i32, i32
  }
  func.func @transform_1(%arg0: i32) -> (i32, i32) {
    %c0_i32 = arith.constant 0 : i32
    %c0_i32_0 = arith.constant 0 : i32
    %c0_i32_1 = arith.constant 0 : i32
    return %c0_i32, %c0_i32_0 : i32, i32
  }
  func.func @transform_2(%arg0: i32) -> (i32, i32) {
    %c0_i32 = arith.constant 0 : i32
    %c0_i32_0 = arith.constant 0 : i32
    %c0_i32_1 = arith.constant 0 : i32
    return %c0_i32, %c0_i32_0 : i32, i32
  }
  func.func @transform_3(%arg0: i32) -> (i32, i32) {
    %c0_i32 = arith.constant 0 : i32
    %c0_i32_0 = arith.constant 0 : i32
    return %arg0, %c0_i32 : i32, i32
  }
}

</mosaic_0001>

<llo_original>
// kernel: tpu_custom_call.1
$region0: #{tpu_custom_call.1}
  #allocation0 [shape = 'u32[]', space=smem, size = 0x4, offset = 0x4, fixed_abs, tag = 'smem constant byte address 0x4 - core index']
  #allocation1 [shape = 'u32[72,128]{1,0:T(1,128)}', space=vmem, size = 0x9000, scoped, tag = 'internal scratch']
  %s0 = inlined_call_operand.hbm [shape: bf16[1024,256], index: 0, kind: input, shape index: {}]
  %s1 = inlined_call_operand.hbm [shape: bf16[256,128], index: 1, kind: input, shape index: {}]
  %s2 = inlined_call_operand.vmem [shape: f32[1,128], index: 2, kind: input, shape index: {}]
  %s3 = inlined_call_operand.hbm [shape: bf16[1024,128], index: 3, kind: output, shape index: {}]
  %s4 = sld [smem:[#allocation0]]
  $region53: #{tpu_custom_call.1} parent=0
    _
  %s6 = ssub.s32 1, %s4
  %s7 = scalar_select 0, %s6, %s4
  $region1: #{tpu_custom_call.1} parent=0
    #allocation2 [shape = 'u8[131072]{0}', space=vmem, size = 0x20000, scoped, tag = 'input window, operand 0']
    #allocation3 [shape = 's32[2]{0}', space=sflag, size = 0x8, scoped, tag = 'scoped memory for tpu_custom_call.1']
    #allocation4 [shape = 's32[2]{0}', space=sflag, size = 0x8, scoped, tag = 'scoped memory for tpu_custom_call.1']
    #allocation5 [shape = 'u8[65536]{0}', space=vmem, size = 0x10000, scoped, tag = 'input window, operand 1, single buffered']
    #allocation6 [shape = 's32[1]{0}', space=sflag, size = 0x4, scoped, tag = 'scoped memory for tpu_custom_call.1']
    #allocation7 [shape = 'u8[65536]{0}', space=vmem, size = 0x10000, scoped, tag = 'output window, operand 0']
    %8 = vsyncpa [#allocation3], 0
    %s9 = scalar_lea.sflag [#allocation3], 1
    %10 = vsyncpa %s9, 0
    %11 = vsyncpa [#allocation6], 0
    %12 = vsyncpa [#allocation4], 0
    %s13 = scalar_lea.sflag [#allocation4], 1
    %14 = vsyncpa %s13, 0
    loop: start=0, step=1, limit=10
    $region2: #{tpu_custom_call.1} parent=1 // loop_pre_header
      _
    $region3: #{tpu_custom_call.1} parent=1 // loop_header
      %s16 = sphi 0, %s20
      %p17 = scmp.ge.s32.totalorder %s16, 10
      %s26 = sphi 0, %s28
      %s29 = sphi 0, %s26
      %s30 = sphi 0, %s29
      %s46 = sphi 0, %s30
      %s50 = sphi 0, %s50
      %s52 = sphi 0, %s50
      %s53 = sphi 0, %s52
      %s67 = sphi 0, %s53
      %s71 = sphi 0, %s71
      %s73 = sphi 0, %s71
      %s74 = sphi 0, %s73
      %s88 = sphi 0, %s74
      %s94 = sphi 0, %s96
      %s97 = sphi 0, %s94
      %s98 = sphi 0, %s97
      %s114 = sphi 0, %s98
    $region4: #{tpu_custom_call.1} parent=1 // loop_header_branch
      %19 = sbr.rel (%p17) target = $region8
    $region5: #{tpu_custom_call.1} parent=1 // loop_body
      %s21 = ssub.s32 %s16, 1
      %s22 = ssub.s32 %s16, 2
      %s23 = sadd.s32 %s16, 1
      %s24 = ssub.s32 %s16, %s23
      %p25 = scmp.eq.s32.totalorder %s24, 0
      %s27 = sadd.s32 %s26, 1
      %s28 = scalar_select %p25, %s26, %s27
      %p31 = pneg %p25
      %p32 = scmp.eq.s32.totalorder %s16, 7
      %p33 = por %p31, %p32
      %p34 = scmp.ne.s32.totalorder %s26, %s29
      %p35 = scmp.eq.s32.totalorder %s16, 0
      %p36 = por %p34, %p35
      %p37 = scmp.ne.s32.totalorder %s26, %s29
      %p38 = scmp.eq.s32.totalorder %s21, 7
      %p39 = por %p37, %p38
      %p40 = scmp.ne.s32.totalorder %s29, %s30
      %p41 = scmp.eq.s32.totalorder %s21, 0
      %p42 = por %p40, %p41
      %p43 = scmp.ne.s32.totalorder %s29, %s30
      %p44 = scmp.eq.s32.totalorder %s22, 7
      %p45 = por %p43, %p44
      %p47 = scmp.ne.s32.totalorder %s30, %s46
      %p48 = scmp.eq.s32.totalorder %s22, 0
      %p49 = por %p47, %p48
      %s51 = sadd.s32 %s50, 1
      %p54 = scmp.eq.s32.totalorder %s16, 7
      %p55 = scmp.ne.s32.totalorder %s50, %s52
      %p56 = scmp.eq.s32.totalorder %s16, 0
      %p57 = por %p55, %p56
      %p58 = scmp.ne.s32.totalorder %s50, %s52
      %p59 = scmp.eq.s32.totalorder %s21, 7
      %p60 = por %p58, %p59
      %p61 = scmp.ne.s32.totalorder %s52, %s53
      %p62 = scmp.eq.s32.totalorder %s21, 0
      %p63 = por %p61, %p62
      %p64 = scmp.ne.s32.totalorder %s52, %s53
      %p65 = scmp.eq.s32.totalorder %s22, 7
      %p66 = por %p64, %p65
      %p68 = scmp.ne.s32.totalorder %s53, %s67
      %p69 = scmp.eq.s32.totalorder %s22, 0
      %p70 = por %p68, %p69
      %s72 = sadd.s32 %s71, 1
      %p75 = scmp.eq.s32.totalorder %s16, 7
      %p76 = scmp.ne.s32.totalorder %s71, %s73
      %p77 = scmp.eq.s32.totalorder %s16, 0
      %p78 = por %p76, %p77
      %p79 = scmp.ne.s32.totalorder %s71, %s73
      %p80 = scmp.eq.s32.totalorder %s21, 7
      %p81 = por %p79, %p80
      %p82 = scmp.ne.s32.totalorder %s73, %s74
      %p83 = scmp.eq.s32.totalorder %s21, 0
      %p84 = por %p82, %p83
      %p85 = scmp.ne.s32.totalorder %s73, %s74
      %p86 = scmp.eq.s32.totalorder %s22, 7
      %p87 = por %p85, %p86
      %p89 = scmp.ne.s32.totalorder %s74, %s88
      %p90 = scmp.eq.s32.totalorder %s22, 0
      %p91 = por %p89, %p90
      %s92 = ssub.s32 %s16, %s23
      %p93 = scmp.eq.s32.totalorder %s92, 0
      %s95 = sadd.s32 %s94, 1
      %s96 = scalar_select %p93, %s94, %s95
      %p99 = pneg %p93
      %p100 = scmp.eq.s32.totalorder %s16, 7
      %p101 = por %p99, %p100
      %p102 = scmp.ne.s32.totalorder %s94, %s97
      %p103 = scmp.eq.s32.totalorder %s16, 0
      %p104 = por %p102, %p103
      %p105 = scmp.ne.s32.totalorder %s94, %s97
      %p106 = scmp.eq.s32.totalorder %s21, 7
      %p107 = por %p105, %p106
      %p108 = scmp.ne.s32.totalorder %s97, %s98
      %p109 = scmp.eq.s32.totalorder %s21, 0
      %p110 = por %p108, %p109
      %p111 = scmp.ne.s32.totalorder %s97, %s98
      %p112 = scmp.eq.s32.totalorder %s22, 7
      %p113 = por %p111, %p112
      %p115 = scmp.ne.s32.totalorder %s98, %s114
      %p116 = scmp.eq.s32.totalorder %s22, 0
      %p117 = por %p115, %p116
      %p118 = scmp.le.s32.totalorder 1, %s16
      %p119 = scmp.lt.s32.totalorder %s16, 9
      %p120 = pnand %p118, %p119
      %p121 = pneg %p120
      // Predicated region
      $region9: #{tpu_custom_call.1} parent=5 // pred_check
        _
      $region10: #{tpu_custom_call.1} parent=5 // pred_check_branch
        %123 = sbr.rel (%p120) target = $region12
      $region11: #{tpu_custom_call.1} parent=5 // pred_region
        %s124 = ssub.s32 %s16, 1
        // Predicated region
        $region13: #{tpu_custom_call.1} parent=11 // pred_check
          %p125 = pneg %p63
        $region14: #{tpu_custom_call.1} parent=11 // pred_check_branch
          %127 = sbr.rel (%p125) target = $region16
        $region15: #{tpu_custom_call.1} parent=11 // pred_region
          %129 = vsyncadd [#allocation6], 0
          %s130 = sshll.u32 %s1, 4
          %s131 = int_to_ptr.hbm [resolvable:$true] %s130
          %s132 = sshll.u32 [#allocation5], 4
          %s133 = int_to_ptr.vmem [resolvable:$true] %s132
          %138 = dma.hbm_to_vmem [thread:$0]  %s131, 2048, %s133, [#allocation6], 64, 64, 4
        $region16: #{tpu_custom_call.1} parent=11 // pred_fallthru
          _
        // Predicated region
        $region17: #{tpu_custom_call.1} parent=11 // pred_check
          %p139 = pneg %p84
        $region18: #{tpu_custom_call.1} parent=11 // pred_check_branch
          %141 = sbr.rel (%p139) target = $region20
        $region19: #{tpu_custom_call.1} parent=11 // pred_region
          _
        $region20: #{tpu_custom_call.1} parent=11 // pred_fallthru
          _
      $region12: #{tpu_custom_call.1} parent=5 // pred_fallthru
        _
      %p142 = scmp.lt.s32.totalorder %s16, 8
      // Predicated region
      $region21: #{tpu_custom_call.1} parent=5 // pred_check
        %p143 = pneg %p142
      $region22: #{tpu_custom_call.1} parent=5 // pred_check_branch
        %145 = sbr.rel (%p143) target = $region24
      $region23: #{tpu_custom_call.1} parent=5 // pred_region
        // Predicated region
        $region25: #{tpu_custom_call.1} parent=23 // pred_check
          %p146 = pneg %p36
        $region26: #{tpu_custom_call.1} parent=23 // pred_check_branch
          %148 = sbr.rel (%p146) target = $region28
        $region27: #{tpu_custom_call.1} parent=23 // pred_region
          %s149 = sand.u32 %s26, 1
          %s150 = scalar_lea.sflag [#allocation3], %s149
          %s151 = sand.u32 %s26, 1
          %s152 = smul.addr %s151, 128
          %s153 = scalar_lea.vmem [#allocation2], %s152
          %s154 = smul.u32 16, %s16
          %156 = vsyncadd %s150, 0
          %s157 = smul.addr %s154, 2
          %s158 = smul.addr %s157, 4
          %s159 = scalar_lea.hbm %s0, %s158
          %s160 = sshll.u32 %s159, 4
          %s161 = int_to_ptr.hbm [resolvable:$true] %s160
          %s162 = sshll.u32 %s153, 4
          %s163 = int_to_ptr.vmem [resolvable:$true] %s162
          %168 = dma.hbm_to_vmem [thread:$0]  %s161, 2048, %s163, %s150, 128, 128, 8
        $region28: #{tpu_custom_call.1} parent=23 // pred_fallthru
          _
      $region24: #{tpu_custom_call.1} parent=5 // pred_fallthru
        _
      %p169 = scmp.le.s32.totalorder 1, %s16
      %p170 = scmp.lt.s32.totalorder %s16, 9
      %p171 = pnand %p169, %p170
      %p172 = pneg %p171
      // Predicated region
      $region29: #{tpu_custom_call.1} parent=5 // pred_check
        _
      $region30: #{tpu_custom_call.1} parent=5 // pred_check_branch
        %174 = sbr.rel (%p171) target = $region32
      $region31: #{tpu_custom_call.1} parent=5 // pred_region
        %s175 = ssub.s32 %s16, 1
        %s176 = sand.u32 %s29, 1
        %s177 = scalar_lea.sflag [#allocation3], %s176
        %s178 = sand.u32 %s29, 1
        %s179 = smul.addr %s178, 128
        %s180 = scalar_lea.vmem [#allocation2], %s179
        // Predicated region
        $region33: #{tpu_custom_call.1} parent=31 // pred_check
          %p181 = pneg %p42
        $region34: #{tpu_custom_call.1} parent=31 // pred_check_branch
          %183 = sbr.rel (%p181) target = $region36
        $region35: #{tpu_custom_call.1} parent=31 // pred_region
          %185 = dma.done %s177, 2048
        $region36: #{tpu_custom_call.1} parent=31 // pred_fallthru
          _
        // Predicated region
        $region37: #{tpu_custom_call.1} parent=31 // pred_check
          %p186 = pneg %p63
        $region38: #{tpu_custom_call.1} parent=31 // pred_check_branch
          %188 = sbr.rel (%p186) target = $region40
        $region39: #{tpu_custom_call.1} parent=31 // pred_region
          %190 = dma.done [#allocation6], 2048
        $region40: #{tpu_custom_call.1} parent=31 // pred_fallthru
          _
        %s191 = sand.u32 %s29, 1
        %s192 = scalar_lea.sflag [#allocation3], %s191
        %s193 = sand.u32 %s29, 1
        %s194 = smul.addr %s193, 128
        %s195 = scalar_lea.vmem [#allocation2], %s194
        %p196 = pneg %p42
        %p197 = pneg %p39
        %p198 = pneg %p63
        %p199 = pneg %p60
        %p200 = pneg %p84
        %p201 = pneg %p81
        %p202 = pneg %p110
        %p203 = pneg %p107
        %s204 = sand.u32 %s97, 1
        %s205 = scalar_lea.sflag [#allocation4], %s204
        %s206 = sand.u32 %s97, 1
        %s207 = smul.addr %s206, 64
        %s208 = scalar_lea.vmem [#allocation7], %s207
        %s209 = smul.u32 16, %s21
        %s210 = smul.u32 16, %s21
        %v211 = vld [vmem:[%s180] sm:$0xff]
        %v212 = vld [vmem:[%s180 + $0x8] sm:$0xff]
        %v213 = vld [vmem:[%s180 + $0x10] sm:$0xff]
        %v214 = vld [vmem:[%s180 + $0x18] sm:$0xff]
        %v215 = vld [vmem:[%s180 + $0x20] sm:$0xff]
        %v216 = vld [vmem:[%s180 + $0x28] sm:$0xff]
        %v217 = vld [vmem:[%s180 + $0x30] sm:$0xff]
        %v218 = vld [vmem:[%s180 + $0x38] sm:$0xff]
        %v219 = vld [vmem:[%s180 + $0x40] sm:$0xff]
        %v220 = vld [vmem:[%s180 + $0x48] sm:$0xff]
        %v221 = vld [vmem:[%s180 + $0x50] sm:$0xff]
        %v222 = vld [vmem:[%s180 + $0x58] sm:$0xff]
        %v223 = vld [vmem:[%s180 + $0x60] sm:$0xff]
        %v224 = vld [vmem:[%s180 + $0x68] sm:$0xff]
        %v225 = vld [vmem:[%s180 + $0x70] sm:$0xff]
        %v226 = vld [vmem:[%s180 + $0x78] sm:$0xff]
        %v227 = vld [vmem:[#allocation5] sm:$0xf]
        %v228 = vld [vmem:[#allocation5 + $0x4] sm:$0xf]
        %v229 = vld [vmem:[#allocation5 + $0x8] sm:$0xf]
        %v230 = vld [vmem:[#allocation5 + $0xc] sm:$0xf]
        %v231 = vld [vmem:[#allocation5 + $0x10] sm:$0xf]
        %v232 = vld [vmem:[#allocation5 + $0x14] sm:$0xf]
        %v233 = vld [vmem:[#allocation5 + $0x18] sm:$0xf]
        %v234 = vld [vmem:[#allocation5 + $0x1c] sm:$0xf]
        %v235 = vld [vmem:[#allocation5 + $0x20] sm:$0xf]
        %v236 = vld [vmem:[#allocation5 + $0x24] sm:$0xf]
        %v237 = vld [vmem:[#allocation5 + $0x28] sm:$0xf]
        %v238 = vld [vmem:[#allocation5 + $0x2c] sm:$0xf]
        %v239 = vld [vmem:[#allocation5 + $0x30] sm:$0xf]
        %v240 = vld [vmem:[#allocation5 + $0x34] sm:$0xf]
        %v241 = vld [vmem:[#allocation5 + $0x38] sm:$0xf]
        %v242 = vld [vmem:[#allocation5 + $0x3c] sm:$0xf]
        %v243 = vld [vmem:[#allocation5 + $0x40] sm:$0xf]
        %v244 = vld [vmem:[#allocation5 + $0x44] sm:$0xf]
        %v245 = vld [vmem:[#allocation5 + $0x48] sm:$0xf]
        %v246 = vld [vmem:[#allocation5 + $0x4c] sm:$0xf]
        %v247 = vld [vmem:[#allocation5 + $0x50] sm:$0xf]
        %v248 = vld [vmem:[#allocation5 + $0x54] sm:$0xf]
        %v249 = vld [vmem:[#allocation5 + $0x58] sm:$0xf]
        %v250 = vld [vmem:[#allocation5 + $0x5c] sm:$0xf]
        %v251 = vld [vmem:[#allocation5 + $0x60] sm:$0xf]
        %v252 = vld [vmem:[#allocation5 + $0x64] sm:$0xf]
        %v253 = vld [vmem:[#allocation5 + $0x68] sm:$0xf]
        %v254 = vld [vmem:[#allocation5 + $0x6c] sm:$0xf]
        %v255 = vld [vmem:[#allocation5 + $0x70] sm:$0xf]
        %v256 = vld [vmem:[#allocation5 + $0x74] sm:$0xf]
        %v257 = vld [vmem:[#allocation5 + $0x78] sm:$0xf]
        %v258 = vld [vmem:[#allocation5 + $0x7c] sm:$0xf]
        %v259 = vld [vmem:[%s2] sm:$0x1]
        %v261 = vperm.slane %v259, 0
        %v279 = vunpack.c.l.b16 %v211
        %v280 = vunpack.c.h.b16 %v211
        %v281 = vunpack.c.l.b16 %v212
        %v282 = vunpack.c.h.b16 %v212
        %v283 = vunpack.c.l.b16 %v213
        %v284 = vunpack.c.h.b16 %v213
        %v285 = vunpack.c.l.b16 %v214
        %v286 = vunpack.c.h.b16 %v214
        %v287 = vunpack.c.l.b16 %v215
        %v288 = vunpack.c.h.b16 %v215
        %v289 = vunpack.c.l.b16 %v216
        %v290 = vunpack.c.h.b16 %v216
        %v291 = vunpack.c.l.b16 %v217
        %v292 = vunpack.c.h.b16 %v217
        %v293 = vunpack.c.l.b16 %v218
        %v294 = vunpack.c.h.b16 %v218
        %v295 = vunpack.c.l.b16 %v219
        %v296 = vunpack.c.h.b16 %v219
        %v297 = vunpack.c.l.b16 %v220
        %v298 = vunpack.c.h.b16 %v220
        %v299 = vunpack.c.l.b16 %v221
        %v300 = vunpack.c.h.b16 %v221
        %v301 = vunpack.c.l.b16 %v222
        %v302 = vunpack.c.h.b16 %v222
        %v303 = vunpack.c.l.b16 %v223
        %v304 = vunpack.c.h.b16 %v223
        %v305 = vunpack.c.l.b16 %v224
        %v306 = vunpack.c.h.b16 %v224
        %v307 = vunpack.c.l.b16 %v225
        %v308 = vunpack.c.h.b16 %v225
        %v309 = vunpack.c.l.b16 %v226
        %v310 = vunpack.c.h.b16 %v226
        %v311 = vpack.c.b16 %v281, %v279
        %v312 = vpack.c.b16 %v282, %v280
        %v313 = vpack.c.b16 %v285, %v283
        %v314 = vpack.c.b16 %v286, %v284
        %v315 = vpack.c.b16 %v289, %v287
        %v316 = vpack.c.b16 %v290, %v288
        %v317 = vpack.c.b16 %v293, %v291
        %v318 = vpack.c.b16 %v294, %v292
        %v319 = vpack.c.b16 %v297, %v295
        %v320 = vpack.c.b16 %v298, %v296
        %v321 = vpack.c.b16 %v301, %v299
        %v322 = vpack.c.b16 %v302, %v300
        %v323 = vpack.c.b16 %v305, %v303
        %v324 = vpack.c.b16 %v306, %v304
        %v325 = vpack.c.b16 %v309, %v307
        %v326 = vpack.c.b16 %v310, %v308
        %v375 = vunpack.c.l.b16 %v227
        %v376 = vunpack.c.l.b16 %v228
        %v377 = vunpack.c.l.b16 %v229
        %v378 = vunpack.c.l.b16 %v230
        %v379 = vunpack.c.l.b16 %v231
        %v380 = vunpack.c.l.b16 %v232
        %v381 = vunpack.c.l.b16 %v233
        %v382 = vunpack.c.l.b16 %v234
        %v383 = vunpack.c.l.b16 %v235
        %v384 = vunpack.c.l.b16 %v236
        %v385 = vunpack.c.l.b16 %v237
        %v386 = vunpack.c.l.b16 %v238
        %v387 = vunpack.c.l.b16 %v239
        %v388 = vunpack.c.l.b16 %v240
        %v389 = vunpack.c.l.b16 %v241
        %v390 = vunpack.c.l.b16 %v242
        %v391 = vunpack.c.l.b16 %v243
        %v392 = vunpack.c.l.b16 %v244
        %v393 = vunpack.c.l.b16 %v245
        %v394 = vunpack.c.l.b16 %v246
        %v395 = vunpack.c.l.b16 %v247
        %v396 = vunpack.c.l.b16 %v248
        %v397 = vunpack.c.l.b16 %v249
        %v398 = vunpack.c.l.b16 %v250
        %v399 = vunpack.c.l.b16 %v251
        %v400 = vunpack.c.l.b16 %v252
        %v401 = vunpack.c.l.b16 %v253
        %v402 = vunpack.c.l.b16 %v254
        %v403 = vunpack.c.l.b16 %v255
        %v404 = vunpack.c.l.b16 %v256
        %v405 = vunpack.c.l.b16 %v257
        %v406 = vunpack.c.l.b16 %v258
        %v407 = vpack.c.b16 %v376, %v375
        %v408 = vpack.c.b16 %v378, %v377
        %v409 = vpack.c.b16 %v380, %v379
        %v410 = vpack.c.b16 %v382, %v381
        %v411 = vpack.c.b16 %v384, %v383
        %v412 = vpack.c.b16 %v386, %v385
        %v413 = vpack.c.b16 %v388, %v387
        %v414 = vpack.c.b16 %v390, %v389
        %v415 = vpack.c.b16 %v392, %v391
        %v416 = vpack.c.b16 %v394, %v393
        %v417 = vpack.c.b16 %v396, %v395
        %v418 = vpack.c.b16 %v398, %v397
        %v419 = vpack.c.b16 %v400, %v399
        %v420 = vpack.c.b16 %v402, %v401
        %v421 = vpack.c.b16 %v404, %v403
        %v422 = vpack.c.b16 %v406, %v405
        %439 = vmatpush.bf16.msra.mxu0 %v414
        %440 = vmatpush.bf16.msra.mxu0 %v413
        %441 = vmatpush.bf16.msra.mxu0 %v412
        %442 = vmatpush.bf16.msra.mxu0 %v411
        %443 = vmatpush.bf16.msra.mxu0 %v410
        %444 = vmatpush.bf16.msra.mxu0 %v409
        %445 = vmatpush.bf16.msra.mxu0 %v408
        %446 = vmatpush.bf16.msra.mxu0 %v407
        %447 = vmatmul.bf16.gmra.mxu0 %v311
        %v448 = vpop.f32.mrf.mxu0
        %v449 = vadd.f32 %v261, %v448
        %v450 = vpop.f32.mrf.mxu0
        %v451 = vadd.f32 %v261, %v450
        %452 = vmatmul.bf16.gmra.mxu0 %v313
        %v453 = vpop.f32.mrf.mxu0
        %v454 = vadd.f32 %v261, %v453
        %v455 = vpop.f32.mrf.mxu0
        %v456 = vadd.f32 %v261, %v455
        %457 = vmatmul.bf16.gmra.mxu0 %v315
        %v458 = vpop.f32.mrf.mxu0
        %v459 = vadd.f32 %v261, %v458
        %v460 = vpop.f32.mrf.mxu0
        %v461 = vadd.f32 %v261, %v460
        %462 = vmatmul.bf16.gmra.mxu0 %v317
        %v463 = vpop.f32.mrf.mxu0
        %v464 = vadd.f32 %v261, %v463
        %v465 = vpop.f32.mrf.mxu0
        %v466 = vadd.f32 %v261, %v465
        %467 = vmatmul.bf16.gmra.mxu0 %v319
        %v468 = vpop.f32.mrf.mxu0
        %v469 = vadd.f32 %v261, %v468
        %v470 = vpop.f32.mrf.mxu0
        %v471 = vadd.f32 %v261, %v470
        %472 = vmatmul.bf16.gmra.mxu0 %v321
        %v473 = vpop.f32.mrf.mxu0
        %v474 = vadd.f32 %v261, %v473
        %v475 = vpop.f32.mrf.mxu0
        %v476 = vadd.f32 %v261, %v475
        %477 = vmatmul.bf16.gmra.mxu0 %v323
        %v478 = vpop.f32.mrf.mxu0
        %v479 = vadd.f32 %v261, %v478
        %v480 = vpop.f32.mrf.mxu0
        %v481 = vadd.f32 %v261, %v480
        %482 = vmatmul.bf16.gmra.mxu0 %v325
        %v483 = vpop.f32.mrf.mxu0
        %v484 = vadd.f32 %v261, %v483
        %v485 = vpop.f32.mrf.mxu0
        %v486 = vadd.f32 %v261, %v485
        %487 = vdwg.mxu0
        %488 = vmatpush.bf16.msra.mxu0 %v422
        %489 = vmatpush.bf16.msra.mxu0 %v421
        %490 = vmatpush.bf16.msra.mxu0 %v420
        %491 = vmatpush.bf16.msra.mxu0 %v419
        %492 = vmatpush.bf16.msra.mxu0 %v418
        %493 = vmatpush.bf16.msra.mxu0 %v417
        %494 = vmatpush.bf16.msra.mxu0 %v416
        %495 = vmatpush.bf16.msra.mxu0 %v415
        %496 = vmatmul.bf16.gmra.mxu0 %v312
        %v497 = vpop.f32.mrf.mxu0
        %v498 = vadd.f32 %v449, %v497
        %v499 = vpop.f32.mrf.mxu0
        %v500 = vadd.f32 %v451, %v499
        %501 = vmatmul.bf16.gmra.mxu0 %v314
        %v502 = vpop.f32.mrf.mxu0
        %v503 = vadd.f32 %v454, %v502
        %v504 = vpop.f32.mrf.mxu0
        %v505 = vadd.f32 %v456, %v504
        %506 = vmatmul.bf16.gmra.mxu0 %v316
        %v507 = vpop.f32.mrf.mxu0
        %v508 = vadd.f32 %v459, %v507
        %v509 = vpop.f32.mrf.mxu0
        %v510 = vadd.f32 %v461, %v509
        %511 = vmatmul.bf16.gmra.mxu0 %v318
        %v512 = vpop.f32.mrf.mxu0
        %v513 = vadd.f32 %v464, %v512
        %v514 = vpop.f32.mrf.mxu0
        %v515 = vadd.f32 %v466, %v514
        %516 = vmatmul.bf16.gmra.mxu0 %v320
        %v517 = vpop.f32.mrf.mxu0
        %v518 = vadd.f32 %v469, %v517
        %v519 = vpop.f32.mrf.mxu0
        %v520 = vadd.f32 %v471, %v519
        %521 = vmatmul.bf16.gmra.mxu0 %v322
        %v522 = vpop.f32.mrf.mxu0
        %v523 = vadd.f32 %v474, %v522
        %v524 = vpop.f32.mrf.mxu0
        %v525 = vadd.f32 %v476, %v524
        %526 = vmatmul.bf16.gmra.mxu0 %v324
        %v527 = vpop.f32.mrf.mxu0
        %v528 = vadd.f32 %v479, %v527
        %v529 = vpop.f32.mrf.mxu0
        %v530 = vadd.f32 %v481, %v529
        %531 = vmatmul.bf16.gmra.mxu0 %v326
        %v532 = vpop.f32.mrf.mxu0
        %v533 = vadd.f32 %v484, %v532
        %v534 = vpop.f32.mrf.mxu0
        %v535 = vadd.f32 %v486, %v534
        %536 = vdwg.mxu0
        %v537 = vmax.f32 %v498, 0.0
        %v538 = vmax.f32 %v500, 0.0
        %v539 = vmax.f32 %v503, 0.0
        %v540 = vmax.f32 %v505, 0.0
        %v541 = vmax.f32 %v508, 0.0
        %v542 = vmax.f32 %v510, 0.0
        %v543 = vmax.f32 %v513, 0.0
        %v544 = vmax.f32 %v515, 0.0
        %v545 = vmax.f32 %v518, 0.0
        %v546 = vmax.f32 %v520, 0.0
        %v547 = vmax.f32 %v523, 0.0
        %v548 = vmax.f32 %v525, 0.0
        %v549 = vmax.f32 %v528, 0.0
        %v550 = vmax.f32 %v530, 0.0
        %v551 = vmax.f32 %v533, 0.0
        %v552 = vmax.f32 %v535, 0.0
        %v553 = vpack.c.bf16 %v537, %v537
        %v554 = vpack.c.bf16 %v538, %v538
        %v555 = vpack.c.bf16 %v539, %v539
        %v556 = vpack.c.bf16 %v540, %v540
        %v557 = vpack.c.bf16 %v541, %v541
        %v558 = vpack.c.bf16 %v542, %v542
        %v559 = vpack.c.bf16 %v543, %v543
        %v560 = vpack.c.bf16 %v544, %v544
        %v561 = vpack.c.bf16 %v545, %v545
        %v562 = vpack.c.bf16 %v546, %v546
        %v563 = vpack.c.bf16 %v547, %v547
        %v564 = vpack.c.bf16 %v548, %v548
        %v565 = vpack.c.bf16 %v549, %v549
        %v566 = vpack.c.bf16 %v550, %v550
        %v567 = vpack.c.bf16 %v551, %v551
        %v568 = vpack.c.bf16 %v552, %v552
        %569 = vst [vmem:[%s208] sm:$0xf] %v553
        %570 = vst [vmem:[%s208 + $0x4] sm:$0xf] %v554
        %571 = vst [vmem:[%s208 + $0x8] sm:$0xf] %v555
        %572 = vst [vmem:[%s208 + $0xc] sm:$0xf] %v556
        %573 = vst [vmem:[%s208 + $0x10] sm:$0xf] %v557
        %574 = vst [vmem:[%s208 + $0x14] sm:$0xf] %v558
        %575 = vst [vmem:[%s208 + $0x18] sm:$0xf] %v559
        %576 = vst [vmem:[%s208 + $0x1c] sm:$0xf] %v560
        %577 = vst [vmem:[%s208 + $0x20] sm:$0xf] %v561
        %578 = vst [vmem:[%s208 + $0x24] sm:$0xf] %v562
        %579 = vst [vmem:[%s208 + $0x28] sm:$0xf] %v563
        %580 = vst [vmem:[%s208 + $0x2c] sm:$0xf] %v564
        %581 = vst [vmem:[%s208 + $0x30] sm:$0xf] %v565
        %582 = vst [vmem:[%s208 + $0x34] sm:$0xf] %v566
        %583 = vst [vmem:[%s208 + $0x38] sm:$0xf] %v567
        %584 = vst [vmem:[%s208 + $0x3c] sm:$0xf] %v568
        %s585 = sand.u32 %s97, 1
        %s586 = scalar_lea.sflag [#allocation4], %s585
        %s587 = sand.u32 %s97, 1
        %s588 = smul.addr %s587, 64
        %s589 = scalar_lea.vmem [#allocation7], %s588
        // Predicated region
        $region41: #{tpu_custom_call.1} parent=31 // pred_check
          %p590 = pneg %p107
        $region42: #{tpu_custom_call.1} parent=31 // pred_check_branch
          %592 = sbr.rel (%p590) target = $region44
        $region43: #{tpu_custom_call.1} parent=31 // pred_region
          %s593 = smul.u32 16, %s21
          %595 = vsyncadd %s586, 0
          %s596 = smul.addr %s593, 4
          %s597 = scalar_lea.hbm %s3, %s596
          %s598 = sshll.u32 %s589, 4
          %s599 = int_to_ptr.vmem [resolvable:$true] %s598
          %s600 = sshll.u32 %s597, 4
          %s601 = int_to_ptr.hbm [resolvable:$true] %s600
          %606 = dma.vmem_to_hbm [thread:$0]  %s599, 1024, %s601, %s586, 64, 64, 4
        $region44: #{tpu_custom_call.1} parent=31 // pred_fallthru
          _
      $region32: #{tpu_custom_call.1} parent=5 // pred_fallthru
        _
      %p607 = scmp.le.s32.totalorder 2, %s16
      // Predicated region
      $region45: #{tpu_custom_call.1} parent=5 // pred_check
        %p608 = pneg %p607
      $region46: #{tpu_custom_call.1} parent=5 // pred_check_branch
        %610 = sbr.rel (%p608) target = $region48
      $region47: #{tpu_custom_call.1} parent=5 // pred_region
        %s611 = ssub.s32 %s16, 2
        // Predicated region
        $region49: #{tpu_custom_call.1} parent=47 // pred_check
          %p612 = pneg %p113
        $region50: #{tpu_custom_call.1} parent=47 // pred_check_branch
          %614 = sbr.rel (%p612) target = $region52
        $region51: #{tpu_custom_call.1} parent=47 // pred_region
          %s615 = sand.u32 %s98, 1
          %s616 = scalar_lea.sflag [#allocation4], %s615
          %s617 = sand.u32 %s98, 1
          %s618 = smul.addr %s617, 64
          %s619 = scalar_lea.vmem [#allocation7], %s618
          %621 = dma.done %s616, 1024
        $region52: #{tpu_custom_call.1} parent=47 // pred_fallthru
          _
      $region48: #{tpu_custom_call.1} parent=5 // pred_fallthru
        _
    $region6: #{tpu_custom_call.1} parent=1 // loop_footer
      %s20 = sadd.s32 1, %s16
    $region7: #{tpu_custom_call.1} parent=1 // loop_footer_branch
      %15 = sbr.rel target = $region3
    $region8: #{tpu_custom_call.1} parent=1 // loop_exit
      _
    %622 = vsyncpa [#allocation3], 1
    %s623 = scalar_lea.sflag [#allocation3], 1
    %624 = vsyncpa %s623, 1
    %625 = vsyncpa [#allocation6], 1
    %626 = vsyncpa [#allocation4], 1
    %s627 = scalar_lea.sflag [#allocation4], 1
    %628 = vsyncpa %s627, 1

</llo_original>
